<compile_context>
chip_gen: v7x
topology: tpu7x:2x2x1
jax: 0.10.0
libtpu: 0.0.40
codegen_flags: <defaults>
</compile_context>

<pallas_src>
import functools
import math

import jax
import jax.numpy as jnp
from jax import lax
from jax.experimental import pallas as pl
from jax.experimental.pallas import tpu as pltpu

_LANE = 128
_VMEM_LIMIT_BYTES = 32 * 1024 * 1024      # safe scoped-VMEM request on v5e / v6e / v7x
_DEFAULT_BLOCK_BYTES = 1 * 1024 * 1024    # ~1 MiB x-block (2 MiB double-buffered)


def _choose_hw_tile(b, c1, hw, max_block_bytes):
  """Largest multiple-of-128 spatial tile whose (B, C1, T) f32 block stays under the byte
  budget, preferring an exact divisor of hw (no zero-padding needed in the wrapper)."""
  if hw <= _LANE:
    return hw                       # full (tiny) spatial extent in one block
  row_bytes = 4 * b * c1
  cap = min(hw, max(1, max_block_bytes // row_bytes))
  cap = max(_LANE, (cap // _LANE) * _LANE)
  t = cap
  while t >= _LANE:
    if hw % t == 0:
      return t                      # exact divisor -> no padding
    t -= _LANE
  return cap                        # no divisor: wrapper zero-pads hw up to a multiple of cap


def se_block_kernel(
    x_ref, z_ref,
    a1_ref, b1_ref, p1_ref,                 # fused mapping layer 1 (both branches share z)
    a2_ref, b2_ref, p2_ref,                 # fused mapping layer 2 (block-diagonal)
    s_ref, bs_ref,                          # fused style projections (block-diagonal)
    w1_ref, w1sq_ref, bc1_ref, prelu1_ref,  # conv1 (modulated 1x1) + bias + PReLU
    w2_ref, w2sq_ref, bc2_ref,              # conv2 (modulated 1x1, lane-padded) + bias
    out_ref, acc_ref,
    *, c1, inv_hw, eps):
  """Weights are pre-transposed to (in, out) and pre-scaled by the equalization consts."""
  k = pl.program_id(0)

  @pl.when(k == 0)
  def _init():
    acc_ref[...] = jnp.zeros_like(acc_ref)

  # partial spatial sum of this (B, C1, T_HW) tile of x -> (B, C1)
  acc_ref[...] += jnp.sum(x_ref[...], axis=-1)

  @pl.when(k == pl.num_programs(0) - 1)
  def _epilogue():
    def prelu(v, a_ref):
      return jnp.where(v >= 0.0, v, a_ref[...] * v)

    pooled = acc_ref[...] * inv_hw                 # (B, C1)  == avg_pool2d over (H, W)
    z = z_ref[...]                                 # (B, D)   latent

    # --- both to_style paths, fused into 3 matmuls ---
    h = prelu(jnp.dot(z, a1_ref[...], preferred_element_type=jnp.float32)
              + b1_ref[...], p1_ref)
    m = prelu(jnp.dot(h, a2_ref[...], preferred_element_type=jnp.float32)
              + b2_ref[...], p2_ref)
    styles = jnp.dot(m, s_ref[...], preferred_element_type=jnp.float32) + bs_ref[...]
    style1 = styles[:, :c1]                        # (B, C1)  modulation for conv1
    style2 = styles[:, c1:]                        # (B, IN)  modulation for conv2

    # --- conv1: modulated + demodulated 1x1 conv on the pooled (1x1) feature map ---
    y1 = jnp.dot(style1 * pooled, w1_ref[...], preferred_element_type=jnp.float32)
    sig1 = jnp.dot(style1 * style1, w1sq_ref[...], preferred_element_type=jnp.float32)
    y1 = y1 * lax.rsqrt(sig1 + eps) + bc1_ref[...]
    y1 = prelu(y1, prelu1_ref)                     # activation1 = PReLU(in_planes)

    # --- conv2 (output channels zero-padded to a lane-dense width) ---
    y2 = jnp.dot(style2 * y1, w2_ref[...], preferred_element_type=jnp.float32)
    sig2 = jnp.dot(style2 * style2, w2sq_ref[...], preferred_element_type=jnp.float32)
    y2 = y2 * lax.rsqrt(sig2 + eps) + bc2_ref[...]

    out_ref[...] = jax.nn.sigmoid(y2)              # activation2 = Sigmoid (lane-dense store)


def prepare_params(params, d_latent, in_planes, c1):
  """One-time parameter folding: equalization constants, style-path fusion,
  squared demodulation weights, lane-dense padding of the final conv output."""
  f32 = jnp.float32
  D, IN, C1 = d_latent, in_planes, c1
  c_map = 1.0 / math.sqrt(D)       # EqualizedWeight([D, D])
  c_s = 1.0 / math.sqrt(D)         # EqualizedWeight([C, D])
  c_w1 = 1.0 / math.sqrt(C1)       # EqualizedWeight([IN, C1, 1, 1])
  c_w2 = 1.0 / math.sqrt(IN)       # EqualizedWeight([C1, IN, 1, 1])

  row = lambda v: jnp.asarray(v, f32).reshape(1, -1)
  zdd = jnp.zeros((D, D), f32)

  # mapping-network layer 1 of both branches (shared input z): concat along outputs
  A1 = jnp.concatenate([params["A10"].T * c_map, params["A20"].T * c_map], axis=1)
  b1 = row(jnp.concatenate([params["b10"], params["b20"]]))
  p1 = row(jnp.concatenate([params["p10"], params["p20"]]))

  # mapping-network layer 2: block-diagonal (branch inputs differ)
  A2 = jnp.block([[params["A11"].T * c_map, zdd],
                  [zdd, params["A21"].T * c_map]])
  b2 = row(jnp.concatenate([params["b11"], params["b21"]]))
  p2 = row(jnp.concatenate([params["p11"], params["p21"]]))

  # final style projections: block-diagonal (2D -> C1 + IN)
  S = jnp.block([[params["S1"].T * c_s, jnp.zeros((D, IN), f32)],
                 [jnp.zeros((D, C1), f32), params["S2"].T * c_s]])
  bS = row(jnp.concatenate([params["bS1"], params["bS2"]]))

  # conv weights with equalization folded in + squared copies for the demodulation sums
  W1t = (params["W1"] * c_w1).T                        # (C1, IN)
  C1p = ((C1 + _LANE - 1) // _LANE) * _LANE            # lane-dense output width
  W2t = jnp.pad((params["W2"] * c_w2).T, ((0, 0), (0, C1p - C1)))   # (IN, C1p)
  bc2 = row(jnp.pad(jnp.asarray(params["bc2"], f32), (0, C1p - C1)))

  return {
      "A1": A1, "b1": b1, "p1": p1, "A2": A2, "b2": b2, "p2": p2, "S": S, "bS": bS,
      "W1t": W1t, "W1sq": W1t * W1t, "bc1": row(params["bc1"]),
      "prelu1": row(params["prelu1"]),
      "W2t": W2t, "W2sq": W2t * W2t, "bc2": bc2,
      "C1p": C1p,
  }


def se_block_forward(x, w, prep, eps=1e-8, max_block_bytes=_DEFAULT_BLOCK_BYTES):
  B, C1, H, W = x.shape
  HW = H * W
  C1p = prep["C1p"]

  x_flat = x.reshape(B, C1, HW)
  t_hw = _choose_hw_tile(B, C1, HW, max_block_bytes)
  hw_pad = (-HW) % t_hw
  if hw_pad:
    # zeros are exact for the spatial sum; the mean divides by the true HW
    x_flat = jnp.pad(x_flat, ((0, 0), (0, 0), (0, hw_pad)))
  grid = ((HW + hw_pad) // t_hw,)

  def const_spec(arr):
    # whole (2-D) array resident in VMEM; constant block index => fetched once across the grid
    return pl.BlockSpec(arr.shape, lambda k: (0, 0))

  consts = (
      w,
      prep["A1"], prep["b1"], prep["p1"],
      prep["A2"], prep["b2"], prep["p2"],
      prep["S"], prep["bS"],
      prep["W1t"], prep["W1sq"], prep["bc1"], prep["prelu1"],
      prep["W2t"], prep["W2sq"], prep["bc2"],
  )

  kernel = functools.partial(se_block_kernel, c1=C1, inv_hw=1.0 / HW, eps=eps)

  out = pl.pallas_call(
      kernel,
      out_shape=jax.ShapeDtypeStruct((B, C1p), jnp.float32),
      grid_spec=pltpu.PrefetchScalarGridSpec(
          num_scalar_prefetch=0,
          grid=grid,
          in_specs=[pl.BlockSpec((B, C1, t_hw), lambda k: (0, 0, k))]
                   + [const_spec(a) for a in consts],
          out_specs=pl.BlockSpec((B, C1p), lambda k: (0, 0)),
          scratch_shapes=[pltpu.VMEM((B, C1), jnp.float32)],
      ),
      compiler_params=pltpu.CompilerParams(
          # the spatial axis is a reduction into the resident accumulator / output
          dimension_semantics=("arbitrary",),
          vmem_limit_bytes=_VMEM_LIMIT_BYTES,
      ),
  )(x_flat, *consts)

  # slice off the lane padding and restore the NCHW (B, C, 1, 1) module output
  return out[:, :C1].reshape(B, C1, 1, 1)


def ref_forward(x, w, params, eps=1e-8):
  """Pure-JAX reference mirroring the PyTorch module step by step (unfused params)."""
  B, C1, H, W = x.shape
  D = w.shape[1]
  IN = params["W1"].shape[0]
  c_map = 1.0 / math.sqrt(D)

  def eq_lin(v, A, b, c):
    return v @ (A * c).T + b

  def prelu(v, a):
    return jnp.where(v >= 0.0, v, a * v)

  pooled = jnp.mean(x, axis=(2, 3))  # avg_pool2d over the full spatial extent -> (B, C1)

  # conv1
  m = prelu(eq_lin(w, params["A10"], params["b10"], c_map), params["p10"])
  m = prelu(eq_lin(m, params["A11"], params["b11"], c_map), params["p11"])
  s1 = eq_lin(m, params["S1"], params["bS1"], 1.0 / math.sqrt(D))
  w1m = params["W1"][None] * (1.0 / math.sqrt(C1)) * s1[:, None, :]     # (B, IN, C1)
  w1m = w1m * lax.rsqrt(jnp.sum(w1m ** 2, axis=2, keepdims=True) + eps)
  y1 = jnp.einsum("boi,bi->bo", w1m, pooled) + params["bc1"]
  y1 = prelu(y1, params["prelu1"])

  # conv2
  m2 = prelu(eq_lin(w, params["A20"], params["b20"], c_map), params["p20"])
  m2 = prelu(eq_lin(m2, params["A21"], params["b21"], c_map), params["p21"])
  s2 = eq_lin(m2, params["S2"], params["bS2"], 1.0 / math.sqrt(D))
  w2m = params["W2"][None] * (1.0 / math.sqrt(IN)) * s2[:, None, :]     # (B, C1, IN)
  w2m = w2m * lax.rsqrt(jnp.sum(w2m ** 2, axis=2, keepdims=True) + eps)
  y2 = jnp.einsum("boi,bi->bo", w2m, y1) + params["bc2"]
  return jax.nn.sigmoid(y2).reshape(B, C1, 1, 1)


def make_params(key, d_latent, in_planes, c1):
  ks = jax.random.split(key, 16)
  f32 = jnp.float32
  n = lambda k, shape: jax.random.normal(k, shape, dtype=f32)
  return {
      # to_style of conv1
      "A10": n(ks[0], (d_latent, d_latent)), "b10": n(ks[1], (d_latent,)),
      "p10": jnp.full((d_latent,), 0.25, f32),
      "A11": n(ks[2], (d_latent, d_latent)), "b11": n(ks[3], (d_latent,)),
      "p11": jnp.full((d_latent,), 0.25, f32),
      "S1": n(ks[4], (c1, d_latent)), "bS1": n(ks[5], (c1,)),
      # conv1 weight / StyleConv bias / PReLU
      "W1": n(ks[6], (in_planes, c1)), "bc1": n(ks[7], (in_planes,)),
      "prelu1": jnp.full((in_planes,), 0.25, f32),
      # to_style of conv2
      "A20": n(ks[8], (d_latent, d_latent)), "b20": n(ks[9], (d_latent,)),
      "p20": jnp.full((d_latent,), 0.25, f32),
      "A21": n(ks[10], (d_latent, d_latent)), "b21": n(ks[11], (d_latent,)),
      "p21": jnp.full((d_latent,), 0.25, f32),
      "S2": n(ks[12], (in_planes, d_latent)), "bS2": n(ks[13], (in_planes,)),
      # conv2 weight / StyleConv bias
      "W2": n(ks[14], (c1, in_planes)), "bc2": n(ks[15], (c1,)),
  }


if __name__ == "__main__":
  # SEBlock(d_latent=8, in_planes=4, out_planes=4, dense_depth=2) on a 32x32 feature map.
  B, D, IN, OUT, DD, H, W = 2, 8, 4, 4, 2, 32, 32
  C1 = OUT + DD  # channels of the SE-block input/output

  key = jax.random.PRNGKey(0)
  kx, kw, kp = jax.random.split(key, 3)
  x = jax.random.normal(kx, (B, C1, H, W), dtype=jnp.float32)   # NCHW, like PyTorch
  w = jax.random.normal(kw, (B, D), dtype=jnp.float32)          # latent vector
  params = make_params(kp, D, IN, C1)
  prep = prepare_params(params, D, IN, C1)   # one-time: fold constants / fuse / pad

  ref = ref_forward(x, w, params)

  # default tiling (single resident block at this small spatial extent)
  out = jax.block_until_ready(se_block_forward(x, w, prep))
  assert out.shape == (B, C1, 1, 1)
  assert jnp.allclose(out, ref, atol=1e-5, rtol=1e-5), (out, ref)

  # force a small block budget to also exercise the multi-step tiled spatial reduction path
  out_tiled = jax.block_until_ready(se_block_forward(x, w, prep, max_block_bytes=16 * 1024))
  assert jnp.allclose(out_tiled, ref, atol=1e-5, rtol=1e-5), (out_tiled, ref)

  print("KERNEL_OK")
</pallas_src>

<mosaic_0001>
module attributes {stable_mosaic.version = 11 : i64} {
  func.func @se_block_kernel(%arg0: i32, %arg1: memref<2x6x1024xf32, #tpu.memory_space<vmem>>, %arg2: memref<2x8xf32, #tpu.memory_space<vmem>>, %arg3: memref<8x16xf32, #tpu.memory_space<vmem>>, %arg4: memref<1x16xf32, #tpu.memory_space<vmem>>, %arg5: memref<1x16xf32, #tpu.memory_space<vmem>>, %arg6: memref<16x16xf32, #tpu.memory_space<vmem>>, %arg7: memref<1x16xf32, #tpu.memory_space<vmem>>, %arg8: memref<1x16xf32, #tpu.memory_space<vmem>>, %arg9: memref<16x10xf32, #tpu.memory_space<vmem>>, %arg10: memref<1x10xf32, #tpu.memory_space<vmem>>, %arg11: memref<6x4xf32, #tpu.memory_space<vmem>>, %arg12: memref<6x4xf32, #tpu.memory_space<vmem>>, %arg13: memref<1x4xf32, #tpu.memory_space<vmem>>, %arg14: memref<1x4xf32, #tpu.memory_space<vmem>>, %arg15: memref<4x128xf32, #tpu.memory_space<vmem>>, %arg16: memref<4x128xf32, #tpu.memory_space<vmem>>, %arg17: memref<1x128xf32, #tpu.memory_space<vmem>>, %arg18: memref<2x128xf32, #tpu.memory_space<vmem>>, %arg19: memref<2x6xf32, #tpu.memory_space<vmem>>) attributes {dimension_semantics = [#tpu.dimension_semantics<arbitrary>], iteration_bounds = array<i64: 1>, scalar_prefetch = 0 : i64, scratch_operands = 1 : i64, tpu.core_type = #tpu.core_type<tc>, window_params = [{transform_indices = @transform_0, window_bounds = array<i64: 2, 6, 1024>}, {pipeline_mode = #tpu.pipeline_mode<synchronous>, transform_indices = @transform_1, window_bounds = array<i64: 2, 8>}, {pipeline_mode = #tpu.pipeline_mode<synchronous>, transform_indices = @transform_2, window_bounds = array<i64: 8, 16>}, {pipeline_mode = #tpu.pipeline_mode<synchronous>, transform_indices = @transform_3, window_bounds = array<i64: 1, 16>}, {pipeline_mode = #tpu.pipeline_mode<synchronous>, transform_indices = @transform_4, window_bounds = array<i64: 1, 16>}, {pipeline_mode = #tpu.pipeline_mode<synchronous>, transform_indices = @transform_5, window_bounds = array<i64: 16, 16>}, {pipeline_mode = #tpu.pipeline_mode<synchronous>, transform_indices = @transform_6, window_bounds = array<i64: 1, 16>}, {pipeline_mode = #tpu.pipeline_mode<synchronous>, transform_indices = @transform_7, window_bounds = array<i64: 1, 16>}, {pipeline_mode = #tpu.pipeline_mode<synchronous>, transform_indices = @transform_8, window_bounds = array<i64: 16, 10>}, {pipeline_mode = #tpu.pipeline_mode<synchronous>, transform_indices = @transform_9, window_bounds = array<i64: 1, 10>}, {pipeline_mode = #tpu.pipeline_mode<synchronous>, transform_indices = @transform_10, window_bounds = array<i64: 6, 4>}, {pipeline_mode = #tpu.pipeline_mode<synchronous>, transform_indices = @transform_11, window_bounds = array<i64: 6, 4>}, {pipeline_mode = #tpu.pipeline_mode<synchronous>, transform_indices = @transform_12, window_bounds = array<i64: 1, 4>}, {pipeline_mode = #tpu.pipeline_mode<synchronous>, transform_indices = @transform_13, window_bounds = array<i64: 1, 4>}, {pipeline_mode = #tpu.pipeline_mode<synchronous>, transform_indices = @transform_14, window_bounds = array<i64: 4, 128>}, {pipeline_mode = #tpu.pipeline_mode<synchronous>, transform_indices = @transform_15, window_bounds = array<i64: 4, 128>}, {pipeline_mode = #tpu.pipeline_mode<synchronous>, transform_indices = @transform_16, window_bounds = array<i64: 1, 128>}, {pipeline_mode = #tpu.pipeline_mode<synchronous>, transform_indices = @transform_17, window_bounds = array<i64: 2, 128>}]} {
    %c0_i32 = arith.constant 0 : i32
    %0 = arith.cmpi eq, %arg0, %c0_i32 : i32
    %1 = arith.extui %0 : i1 to i32
    %c0_i32_0 = arith.constant 0 : i32
    %2 = arith.cmpi ne, %1, %c0_i32_0 : i32
    scf.if %2 {
      %cst_9 = arith.constant 0.000000e+00 : f32
      %11 = vector.broadcast %cst_9 : f32 to vector<2x6xf32>
      %c0_10 = arith.constant 0 : index
      %c0_11 = arith.constant 0 : index
      %12 = vector.load %arg19[%c0_10, %c0_11] : memref<2x6xf32, #tpu.memory_space<vmem>>, vector<2x6xf32>
      tpu.vector_store %arg19[%c0_10, %c0_11], %11 {strides = array<i32>} : memref<2x6xf32, #tpu.memory_space<vmem>>, vector<2x6xf32>,
    } else {
    }
    %c0 = arith.constant 0 : index
    %c0_1 = arith.constant 0 : index
    %3 = vector.load %arg19[%c0, %c0_1] : memref<2x6xf32, #tpu.memory_space<vmem>>, vector<2x6xf32>
    %c0_2 = arith.constant 0 : index
    %c0_3 = arith.constant 0 : index
    %c0_4 = arith.constant 0 : index
    %4 = vector.load %arg1[%c0_2, %c0_3, %c0_4] : memref<2x6x1024xf32, #tpu.memory_space<vmem>>, vector<2x6x1024xf32>
    %cst = arith.constant dense<0.000000e+00> : vector<2x6xf32>
    %5 = vector.multi_reduction <add>, %4, %cst [2] : vector<2x6x1024xf32> to vector<2x6xf32>
    %6 = arith.addf %3, %5 : vector<2x6xf32>
    %c0_5 = arith.constant 0 : index
    %c0_6 = arith.constant 0 : index
    %7 = vector.load %arg19[%c0_5, %c0_6] : memref<2x6xf32, #tpu.memory_space<vmem>>, vector<2x6xf32>
    tpu.vector_store %arg19[%c0_5, %c0_6], %6 {strides = array<i32>} : memref<2x6xf32, #tpu.memory_space<vmem>>, vector<2x6xf32>,
    %c0_i32_7 = arith.constant 0 : i32
    %8 = arith.cmpi eq, %arg0, %c0_i32_7 : i32
    %9 = arith.extui %8 : i1 to i32
    %c0_i32_8 = arith.constant 0 : i32
    %10 = arith.cmpi ne, %9, %c0_i32_8 : i32
    scf.if %10 {
      %c0_9 = arith.constant 0 : index
      %c0_10 = arith.constant 0 : index
      %11 = vector.load %arg19[%c0_9, %c0_10] : memref<2x6xf32, #tpu.memory_space<vmem>>, vector<2x6xf32>
      %cst_11 = arith.constant 9.765625E-4 : f32
      %12 = vector.broadcast %cst_11 : f32 to vector<2x6xf32>
      %13 = arith.mulf %11, %12 : vector<2x6xf32>
      %c0_12 = arith.constant 0 : index
      %c0_13 = arith.constant 0 : index
      %14 = vector.load %arg2[%c0_12, %c0_13] : memref<2x8xf32, #tpu.memory_space<vmem>>, vector<2x8xf32>
      %c0_14 = arith.constant 0 : index
      %c0_15 = arith.constant 0 : index
      %15 = vector.load %arg3[%c0_14, %c0_15] : memref<8x16xf32, #tpu.memory_space<vmem>>, vector<8x16xf32>
      %cst_16 = arith.constant dense<0.000000e+00> : vector<2x16xf32>
      %16 = tpu.matmul %14, %15, %cst_16 {dimension_numbers = #tpu.dot_dimension_numbers<[1], [0], [0], [1], [0, 0, 1, 1], [], []>} : vector<2x8xf32>, vector<8x16xf32>, vector<2x16xf32> -> vector<2x16xf32>
      %c0_17 = arith.constant 0 : index
      %c0_18 = arith.constant 0 : index
      %17 = vector.load %arg4[%c0_17, %c0_18] : memref<1x16xf32, #tpu.memory_space<vmem>>, vector<1x16xf32>
      %18 = vector.broadcast %17 : vector<1x16xf32> to vector<2x16xf32>
      %19 = arith.addf %16, %18 : vector<2x16xf32>
      %cst_19 = arith.constant 0.000000e+00 : f32
      %20 = vector.broadcast %cst_19 : f32 to vector<2x16xf32>
      %21 = arith.cmpf oge, %19, %20 : vector<2x16xf32>
      %c0_20 = arith.constant 0 : index
      %c0_21 = arith.constant 0 : index
      %22 = vector.load %arg5[%c0_20, %c0_21] : memref<1x16xf32, #tpu.memory_space<vmem>>, vector<1x16xf32>
      %23 = vector.broadcast %22 : vector<1x16xf32> to vector<2x16xf32>
      %24 = arith.mulf %23, %19 : vector<2x16xf32>
      %25 = arith.select %21, %19, %24 : vector<2x16xi1>, vector<2x16xf32>
      %c0_22 = arith.constant 0 : index
      %c0_23 = arith.constant 0 : index
      %26 = vector.load %arg6[%c0_22, %c0_23] : memref<16x16xf32, #tpu.memory_space<vmem>>, vector<16x16xf32>
      %cst_24 = arith.constant dense<0.000000e+00> : vector<2x16xf32>
      %27 = tpu.matmul %25, %26, %cst_24 {dimension_numbers = #tpu.dot_dimension_numbers<[1], [0], [0], [1], [0, 0, 1, 1], [], []>} : vector<2x16xf32>, vector<16x16xf32>, vector<2x16xf32> -> vector<2x16xf32>
      %c0_25 = arith.constant 0 : index
      %c0_26 = arith.constant 0 : index
      %28 = vector.load %arg7[%c0_25, %c0_26] : memref<1x16xf32, #tpu.memory_space<vmem>>, vector<1x16xf32>
      %29 = vector.broadcast %28 : vector<1x16xf32> to vector<2x16xf32>
      %30 = arith.addf %27, %29 : vector<2x16xf32>
      %cst_27 = arith.constant 0.000000e+00 : f32
      %31 = vector.broadcast %cst_27 : f32 to vector<2x16xf32>
      %32 = arith.cmpf oge, %30, %31 : vector<2x16xf32>
      %c0_28 = arith.constant 0 : index
      %c0_29 = arith.constant 0 : index
      %33 = vector.load %arg8[%c0_28, %c0_29] : memref<1x16xf32, #tpu.memory_space<vmem>>, vector<1x16xf32>
      %34 = vector.broadcast %33 : vector<1x16xf32> to vector<2x16xf32>
      %35 = arith.mulf %34, %30 : vector<2x16xf32>
      %36 = arith.select %32, %30, %35 : vector<2x16xi1>, vector<2x16xf32>
      %c0_30 = arith.constant 0 : index
      %c0_31 = arith.constant 0 : index
      %37 = vector.load %arg9[%c0_30, %c0_31] : memref<16x10xf32, #tpu.memory_space<vmem>>, vector<16x10xf32>
      %cst_32 = arith.constant dense<0.000000e+00> : vector<2x10xf32>
      %38 = tpu.matmul %36, %37, %cst_32 {dimension_numbers = #tpu.dot_dimension_numbers<[1], [0], [0], [1], [0, 0, 1, 1], [], []>} : vector<2x16xf32>, vector<16x10xf32>, vector<2x10xf32> -> vector<2x10xf32>
      %c0_33 = arith.constant 0 : index
      %c0_34 = arith.constant 0 : index
      %39 = vector.load %arg10[%c0_33, %c0_34] : memref<1x10xf32, #tpu.memory_space<vmem>>, vector<1x10xf32>
      %40 = vector.broadcast %39 : vector<1x10xf32> to vector<2x10xf32>
      %41 = arith.addf %38, %40 : vector<2x10xf32>
      %42 = vector.extract_strided_slice %41 {offsets = [0, 0], sizes = [2, 6], strides = [1, 1]} : vector<2x10xf32> to vector<2x6xf32>
      %43 = vector.extract_strided_slice %41 {offsets = [0, 6], sizes = [2, 4], strides = [1, 1]} : vector<2x10xf32> to vector<2x4xf32>
      %44 = arith.mulf %42, %13 : vector<2x6xf32>
      %c0_35 = arith.constant 0 : index
      %c0_36 = arith.constant 0 : index
      %45 = vector.load %arg11[%c0_35, %c0_36] : memref<6x4xf32, #tpu.memory_space<vmem>>, vector<6x4xf32>
      %cst_37 = arith.constant dense<0.000000e+00> : vector<2x4xf32>
      %46 = tpu.matmul %44, %45, %cst_37 {dimension_numbers = #tpu.dot_dimension_numbers<[1], [0], [0], [1], [0, 0, 1, 1], [], []>} : vector<2x6xf32>, vector<6x4xf32>, vector<2x4xf32> -> vector<2x4xf32>
      %47 = arith.mulf %42, %42 : vector<2x6xf32>
      %c0_38 = arith.constant 0 : index
      %c0_39 = arith.constant 0 : index
      %48 = vector.load %arg12[%c0_38, %c0_39] : memref<6x4xf32, #tpu.memory_space<vmem>>, vector<6x4xf32>
      %cst_40 = arith.constant dense<0.000000e+00> : vector<2x4xf32>
      %49 = tpu.matmul %47, %48, %cst_40 {dimension_numbers = #tpu.dot_dimension_numbers<[1], [0], [0], [1], [0, 0, 1, 1], [], []>} : vector<2x6xf32>, vector<6x4xf32>, vector<2x4xf32> -> vector<2x4xf32>
      %cst_41 = arith.constant 9.99999993E-9 : f32
      %50 = vector.broadcast %cst_41 : f32 to vector<2x4xf32>
      %51 = arith.addf %49, %50 : vector<2x4xf32>
      %52 = math.rsqrt %51 : vector<2x4xf32>
      %53 = arith.mulf %46, %52 : vector<2x4xf32>
      %c0_42 = arith.constant 0 : index
      %c0_43 = arith.constant 0 : index
      %54 = vector.load %arg13[%c0_42, %c0_43] : memref<1x4xf32, #tpu.memory_space<vmem>>, vector<1x4xf32>
      %55 = vector.broadcast %54 : vector<1x4xf32> to vector<2x4xf32>
      %56 = arith.addf %53, %55 : vector<2x4xf32>
      %cst_44 = arith.constant 0.000000e+00 : f32
      %57 = vector.broadcast %cst_44 : f32 to vector<2x4xf32>
      %58 = arith.cmpf oge, %56, %57 : vector<2x4xf32>
      %c0_45 = arith.constant 0 : index
      %c0_46 = arith.constant 0 : index
      %59 = vector.load %arg14[%c0_45, %c0_46] : memref<1x4xf32, #tpu.memory_space<vmem>>, vector<1x4xf32>
      %60 = vector.broadcast %59 : vector<1x4xf32> to vector<2x4xf32>
      %61 = arith.mulf %60, %56 : vector<2x4xf32>
      %62 = arith.select %58, %56, %61 : vector<2x4xi1>, vector<2x4xf32>
      %63 = arith.mulf %43, %62 : vector<2x4xf32>
      %c0_47 = arith.constant 0 : index
      %c0_48 = arith.constant 0 : index
      %64 = vector.load %arg15[%c0_47, %c0_48] : memref<4x128xf32, #tpu.memory_space<vmem>>, vector<4x128xf32>
      %cst_49 = arith.constant dense<0.000000e+00> : vector<2x128xf32>
      %65 = tpu.matmul %63, %64, %cst_49 {dimension_numbers = #tpu.dot_dimension_numbers<[1], [0], [0], [1], [0, 0, 1, 1], [], []>} : vector<2x4xf32>, vector<4x128xf32>, vector<2x128xf32> -> vector<2x128xf32>
      %66 = arith.mulf %43, %43 : vector<2x4xf32>
      %c0_50 = arith.constant 0 : index
      %c0_51 = arith.constant 0 : index
      %67 = vector.load %arg16[%c0_50, %c0_51] : memref<4x128xf32, #tpu.memory_space<vmem>>, vector<4x128xf32>
      %cst_52 = arith.constant dense<0.000000e+00> : vector<2x128xf32>
      %68 = tpu.matmul %66, %67, %cst_52 {dimension_numbers = #tpu.dot_dimension_numbers<[1], [0], [0], [1], [0, 0, 1, 1], [], []>} : vector<2x4xf32>, vector<4x128xf32>, vector<2x128xf32> -> vector<2x128xf32>
      %cst_53 = arith.constant 9.99999993E-9 : f32
      %69 = vector.broadcast %cst_53 : f32 to vector<2x128xf32>
      %70 = arith.addf %68, %69 : vector<2x128xf32>
      %71 = math.rsqrt %70 : vector<2x128xf32>
      %72 = arith.mulf %65, %71 : vector<2x128xf32>
      %c0_54 = arith.constant 0 : index
      %c0_55 = arith.constant 0 : index
      %73 = vector.load %arg17[%c0_54, %c0_55] : memref<1x128xf32, #tpu.memory_space<vmem>>, vector<1x128xf32>
      %74 = vector.broadcast %73 : vector<1x128xf32> to vector<2x128xf32>
      %75 = arith.addf %72, %74 : vector<2x128xf32>
      %76 = arith.negf %75 : vector<2x128xf32>
      %77 = math.exp %76 : vector<2x128xf32>
      %cst_56 = arith.constant 1.000000e+00 : f32
      %78 = vector.broadcast %cst_56 : f32 to vector<2x128xf32>
      %79 = arith.addf %78, %77 : vector<2x128xf32>
      %80 = arith.divf %78, %79 : vector<2x128xf32>
      %c0_57 = arith.constant 0 : index
      %c0_58 = arith.constant 0 : index
      %81 = vector.load %arg18[%c0_57, %c0_58] : memref<2x128xf32, #tpu.memory_space<vmem>>, vector<2x128xf32>
      tpu.vector_store %arg18[%c0_57, %c0_58], %80 {strides = array<i32>} : memref<2x128xf32, #tpu.memory_space<vmem>>, vector<2x128xf32>,
    } else {
    }
    return
  }
  func.func @transform_0(%arg0: i32) -> (i32, i32, i32) {
    %c0_i32 = arith.constant 0 : i32
    %c0_i32_0 = arith.constant 0 : i32
    %c0_i32_1 = arith.constant 0 : i32
    return %c0_i32, %c0_i32_0, %arg0 : i32, i32, i32
  }
  func.func @transform_1(%arg0: i32) -> (i32, i32) {
    %c0_i32 = arith.constant 0 : i32
    %c0_i32_0 = arith.constant 0 : i32
    %c0_i32_1 = arith.constant 0 : i32
    return %c0_i32, %c0_i32_0 : i32, i32
  }
  func.func @transform_2(%arg0: i32) -> (i32, i32) {
    %c0_i32 = arith.constant 0 : i32
    %c0_i32_0 = arith.constant 0 : i32
    %c0_i32_1 = arith.constant 0 : i32
    return %c0_i32, %c0_i32_0 : i32, i32
  }
  func.func @transform_3(%arg0: i32) -> (i32, i32) {
    %c0_i32 = arith.constant 0 : i32
    %c0_i32_0 = arith.constant 0 : i32
    %c0_i32_1 = arith.constant 0 : i32
    return %c0_i32, %c0_i32_0 : i32, i32
  }
  func.func @transform_4(%arg0: i32) -> (i32, i32) {
    %c0_i32 = arith.constant 0 : i32
    %c0_i32_0 = arith.constant 0 : i32
    %c0_i32_1 = arith.constant 0 : i32
    return %c0_i32, %c0_i32_0 : i32, i32
  }
  func.func @transform_5(%arg0: i32) -> (i32, i32) {
    %c0_i32 = arith.constant 0 : i32
    %c0_i32_0 = arith.constant 0 : i32
    %c0_i32_1 = arith.constant 0 : i32
    return %c0_i32, %c0_i32_0 : i32, i32
  }
  func.func @transform_6(%arg0: i32) -> (i32, i32) {
    %c0_i32 = arith.constant 0 : i32
    %c0_i32_0 = arith.constant 0 : i32
    %c0_i32_1 = arith.constant 0 : i32
    return %c0_i32, %c0_i32_0 : i32, i32
  }
  func.func @transform_7(%arg0: i32) -> (i32, i32) {
    %c0_i32 = arith.constant 0 : i32
    %c0_i32_0 = arith.constant 0 : i32
    %c0_i32_1 = arith.constant 0 : i32
    return %c0_i32, %c0_i32_0 : i32, i32
  }
  func.func @transform_8(%arg0: i32) -> (i32, i32) {
    %c0_i32 = arith.constant 0 : i32
    %c0_i32_0 = arith.constant 0 : i32
    %c0_i32_1 = arith.constant 0 : i32
    return %c0_i32, %c0_i32_0 : i32, i32
  }
  func.func @transform_9(%arg0: i32) -> (i32, i32) {
    %c0_i32 = arith.constant 0 : i32
    %c0_i32_0 = arith.constant 0 : i32
    %c0_i32_1 = arith.constant 0 : i32
    return %c0_i32, %c0_i32_0 : i32, i32
  }
  func.func @transform_10(%arg0: i32) -> (i32, i32) {
    %c0_i32 = arith.constant 0 : i32
    %c0_i32_0 = arith.constant 0 : i32
    %c0_i32_1 = arith.constant 0 : i32
    return %c0_i32, %c0_i32_0 : i32, i32
  }
  func.func @transform_11(%arg0: i32) -> (i32, i32) {
    %c0_i32 = arith.constant 0 : i32
    %c0_i32_0 = arith.constant 0 : i32
    %c0_i32_1 = arith.constant 0 : i32
    return %c0_i32, %c0_i32_0 : i32, i32
  }
  func.func @transform_12(%arg0: i32) -> (i32, i32) {
    %c0_i32 = arith.constant 0 : i32
    %c0_i32_0 = arith.constant 0 : i32
    %c0_i32_1 = arith.constant 0 : i32
    return %c0_i32, %c0_i32_0 : i32, i32
  }
  func.func @transform_13(%arg0: i32) -> (i32, i32) {
    %c0_i32 = arith.constant 0 : i32
    %c0_i32_0 = arith.constant 0 : i32
    %c0_i32_1 = arith.constant 0 : i32
    return %c0_i32, %c0_i32_0 : i32, i32
  }
  func.func @transform_14(%arg0: i32) -> (i32, i32) {
    %c0_i32 = arith.constant 0 : i32
    %c0_i32_0 = arith.constant 0 : i32
    %c0_i32_1 = arith.constant 0 : i32
    return %c0_i32, %c0_i32_0 : i32, i32
  }
  func.func @transform_15(%arg0: i32) -> (i32, i32) {
    %c0_i32 = arith.constant 0 : i32
    %c0_i32_0 = arith.constant 0 : i32
    %c0_i32_1 = arith.constant 0 : i32
    return %c0_i32, %c0_i32_0 : i32, i32
  }
  func.func @transform_16(%arg0: i32) -> (i32, i32) {
    %c0_i32 = arith.constant 0 : i32
    %c0_i32_0 = arith.constant 0 : i32
    %c0_i32_1 = arith.constant 0 : i32
    return %c0_i32, %c0_i32_0 : i32, i32
  }
  func.func @transform_17(%arg0: i32) -> (i32, i32) {
    %c0_i32 = arith.constant 0 : i32
    %c0_i32_0 = arith.constant 0 : i32
    %c0_i32_1 = arith.constant 0 : i32
    return %c0_i32, %c0_i32_0 : i32, i32
  }
}

</mosaic_0001>

<llo_original>
// kernel: tpu_custom_call.1
$region0: #{tpu_custom_call.1}
  #allocation0 [shape = 'u32[]', space=smem, size = 0x4, offset = 0x4, fixed_abs, tag = 'smem constant byte address 0x4 - core index']
  #allocation1 [shape = 'u32[144,128]{1,0:T(1,128)}', space=vmem, size = 0x12000, scoped, tag = 'internal scratch']
  #allocation2 [shape = 'f32[2,6]{1,0:T(2,128)}', space=vmem, size = 0x400, scoped, tag = 'scratch operand']
  %s0 = inlined_call_operand.vmem [shape: f32[2,6,1024], index: 0, kind: input, shape index: {}]
  %s1 = inlined_call_operand.vmem [shape: f32[2,8], index: 1, kind: input, shape index: {}]
  %s2 = inlined_call_operand.vmem [shape: f32[8,16], index: 2, kind: input, shape index: {}]
  %s3 = inlined_call_operand.vmem [shape: f32[1,16], index: 3, kind: input, shape index: {}]
  %s4 = inlined_call_operand.vmem [shape: f32[1,16], index: 4, kind: input, shape index: {}]
  %s5 = inlined_call_operand.vmem [shape: f32[16,16], index: 5, kind: input, shape index: {}]
  %s6 = inlined_call_operand.vmem [shape: f32[1,16], index: 6, kind: input, shape index: {}]
  %s7 = inlined_call_operand.vmem [shape: f32[1,16], index: 7, kind: input, shape index: {}]
  %s8 = inlined_call_operand.vmem [shape: f32[16,10], index: 8, kind: input, shape index: {}]
  %s9 = inlined_call_operand.vmem [shape: f32[1,10], index: 9, kind: input, shape index: {}]
  %s10 = inlined_call_operand.vmem [shape: f32[6,4], index: 10, kind: input, shape index: {}]
  %s11 = inlined_call_operand.vmem [shape: f32[6,4], index: 11, kind: input, shape index: {}]
  %s12 = inlined_call_operand.vmem [shape: f32[1,4], index: 12, kind: input, shape index: {}]
  %s13 = inlined_call_operand.vmem [shape: f32[1,4], index: 13, kind: input, shape index: {}]
  %s14 = inlined_call_operand.vmem [shape: f32[4,128], index: 14, kind: input, shape index: {}]
  %s15 = inlined_call_operand.vmem [shape: f32[4,128], index: 15, kind: input, shape index: {}]
  %s16 = inlined_call_operand.vmem [shape: f32[1,128], index: 16, kind: input, shape index: {}]
  %s17 = inlined_call_operand.hbm [shape: f32[2,128], index: 17, kind: output, shape index: {}]
  %s18 = sld [smem:[#allocation0]]
  $region86: #{tpu_custom_call.1} parent=0
    _
  %s20 = ssub.s32 1, %s18
  %s21 = scalar_select 0, %s20, %s18
  $region1: #{tpu_custom_call.1} parent=0
    #allocation3 [shape = 'u8[1024]{0}', space=vmem, size = 0x400, scoped, tag = 'output window, operand 0, single buffered']
    #allocation4 [shape = 's32[1]{0}', space=sflag, size = 0x4, scoped, tag = 'scoped memory for tpu_custom_call.1']
    %22 = vsyncpa [#allocation4], 0
    // Predicated region
    $region2: #{tpu_custom_call.1} parent=1 // pred_check
      _
    $region3: #{tpu_custom_call.1} parent=1 // pred_check_branch
      %24 = sbr.rel (0) target = $region5
    $region4: #{tpu_custom_call.1} parent=1 // pred_region
      _
    $region5: #{tpu_custom_call.1} parent=1 // pred_fallthru
      _
    // Predicated region
    $region6: #{tpu_custom_call.1} parent=1 // pred_check
      _
    $region7: #{tpu_custom_call.1} parent=1 // pred_check_branch
      %26 = sbr.rel (0) target = $region9
    $region8: #{tpu_custom_call.1} parent=1 // pred_region
      _
    $region9: #{tpu_custom_call.1} parent=1 // pred_fallthru
      _
    // Predicated region
    $region10: #{tpu_custom_call.1} parent=1 // pred_check
      _
    $region11: #{tpu_custom_call.1} parent=1 // pred_check_branch
      %28 = sbr.rel (0) target = $region13
    $region12: #{tpu_custom_call.1} parent=1 // pred_region
      _
    $region13: #{tpu_custom_call.1} parent=1 // pred_fallthru
      _
    // Predicated region
    $region14: #{tpu_custom_call.1} parent=1 // pred_check
      _
    $region15: #{tpu_custom_call.1} parent=1 // pred_check_branch
      %30 = sbr.rel (0) target = $region17
    $region16: #{tpu_custom_call.1} parent=1 // pred_region
      _
    $region17: #{tpu_custom_call.1} parent=1 // pred_fallthru
      _
    // Predicated region
    $region18: #{tpu_custom_call.1} parent=1 // pred_check
      _
    $region19: #{tpu_custom_call.1} parent=1 // pred_check_branch
      %32 = sbr.rel (0) target = $region21
    $region20: #{tpu_custom_call.1} parent=1 // pred_region
      _
    $region21: #{tpu_custom_call.1} parent=1 // pred_fallthru
      _
    // Predicated region
    $region22: #{tpu_custom_call.1} parent=1 // pred_check
      _
    $region23: #{tpu_custom_call.1} parent=1 // pred_check_branch
      %34 = sbr.rel (0) target = $region25
    $region24: #{tpu_custom_call.1} parent=1 // pred_region
      _
    $region25: #{tpu_custom_call.1} parent=1 // pred_fallthru
      _
    // Predicated region
    $region26: #{tpu_custom_call.1} parent=1 // pred_check
      _
    $region27: #{tpu_custom_call.1} parent=1 // pred_check_branch
      %36 = sbr.rel (0) target = $region29
    $region28: #{tpu_custom_call.1} parent=1 // pred_region
      _
    $region29: #{tpu_custom_call.1} parent=1 // pred_fallthru
      _
    // Predicated region
    $region30: #{tpu_custom_call.1} parent=1 // pred_check
      _
    $region31: #{tpu_custom_call.1} parent=1 // pred_check_branch
      %38 = sbr.rel (0) target = $region33
    $region32: #{tpu_custom_call.1} parent=1 // pred_region
      _
    $region33: #{tpu_custom_call.1} parent=1 // pred_fallthru
      _
    // Predicated region
    $region34: #{tpu_custom_call.1} parent=1 // pred_check
      _
    $region35: #{tpu_custom_call.1} parent=1 // pred_check_branch
      %40 = sbr.rel (0) target = $region37
    $region36: #{tpu_custom_call.1} parent=1 // pred_region
      _
    $region37: #{tpu_custom_call.1} parent=1 // pred_fallthru
      _
    // Predicated region
    $region38: #{tpu_custom_call.1} parent=1 // pred_check
      _
    $region39: #{tpu_custom_call.1} parent=1 // pred_check_branch
      %42 = sbr.rel (0) target = $region41
    $region40: #{tpu_custom_call.1} parent=1 // pred_region
      _
    $region41: #{tpu_custom_call.1} parent=1 // pred_fallthru
      _
    // Predicated region
    $region42: #{tpu_custom_call.1} parent=1 // pred_check
      _
    $region43: #{tpu_custom_call.1} parent=1 // pred_check_branch
      %44 = sbr.rel (0) target = $region45
    $region44: #{tpu_custom_call.1} parent=1 // pred_region
      _
    $region45: #{tpu_custom_call.1} parent=1 // pred_fallthru
      _
    // Predicated region
    $region46: #{tpu_custom_call.1} parent=1 // pred_check
      _
    $region47: #{tpu_custom_call.1} parent=1 // pred_check_branch
      %46 = sbr.rel (0) target = $region49
    $region48: #{tpu_custom_call.1} parent=1 // pred_region
      _
    $region49: #{tpu_custom_call.1} parent=1 // pred_fallthru
      _
    // Predicated region
    $region50: #{tpu_custom_call.1} parent=1 // pred_check
      _
    $region51: #{tpu_custom_call.1} parent=1 // pred_check_branch
      %48 = sbr.rel (0) target = $region53
    $region52: #{tpu_custom_call.1} parent=1 // pred_region
      _
    $region53: #{tpu_custom_call.1} parent=1 // pred_fallthru
      _
    // Predicated region
    $region54: #{tpu_custom_call.1} parent=1 // pred_check
      _
    $region55: #{tpu_custom_call.1} parent=1 // pred_check_branch
      %50 = sbr.rel (0) target = $region57
    $region56: #{tpu_custom_call.1} parent=1 // pred_region
      _
    $region57: #{tpu_custom_call.1} parent=1 // pred_fallthru
      _
    // Predicated region
    $region58: #{tpu_custom_call.1} parent=1 // pred_check
      _
    $region59: #{tpu_custom_call.1} parent=1 // pred_check_branch
      %52 = sbr.rel (0) target = $region61
    $region60: #{tpu_custom_call.1} parent=1 // pred_region
      _
    $region61: #{tpu_custom_call.1} parent=1 // pred_fallthru
      _
    // Predicated region
    $region62: #{tpu_custom_call.1} parent=1 // pred_check
      _
    $region63: #{tpu_custom_call.1} parent=1 // pred_check_branch
      %54 = sbr.rel (0) target = $region65
    $region64: #{tpu_custom_call.1} parent=1 // pred_region
      _
    $region65: #{tpu_custom_call.1} parent=1 // pred_fallthru
      _
    // Predicated region
    $region66: #{tpu_custom_call.1} parent=1 // pred_check
      _
    $region67: #{tpu_custom_call.1} parent=1 // pred_check_branch
      %56 = sbr.rel (0) target = $region69
    $region68: #{tpu_custom_call.1} parent=1 // pred_region
      _
    $region69: #{tpu_custom_call.1} parent=1 // pred_fallthru
      _
    %p57 = scmp.eq.s32.totalorder 0, 0
    // Predicated region
    $region70: #{tpu_custom_call.1} parent=1 // pred_check
      %p58 = pneg %p57
    $region71: #{tpu_custom_call.1} parent=1 // pred_check_branch
      %60 = sbr.rel (%p58) target = $region73
    $region72: #{tpu_custom_call.1} parent=1 // pred_region
      %vm61 = vcmask 41984
      %62 = vst.msk [vmem:[#allocation2] sm:$0x3] %vm61, 0.0
    $region73: #{tpu_custom_call.1} parent=1 // pred_fallthru
      _
    %v63 = vld [vmem:[#allocation2] sm:$0x3]
    %v64 = vld [vmem:[%s0] sm:$0x3f]
    %v65 = vld [vmem:[%s0 + $0x8] sm:$0x3f]
    %v66 = vld [vmem:[%s0 + $0x10] sm:$0x3f]
    %v67 = vld [vmem:[%s0 + $0x18] sm:$0x3f]
    %v68 = vld [vmem:[%s0 + $0x20] sm:$0x3f]
    %v69 = vld [vmem:[%s0 + $0x28] sm:$0x3f]
    %v70 = vld [vmem:[%s0 + $0x30] sm:$0x3f]
    %v71 = vld [vmem:[%s0 + $0x38] sm:$0x3f]
    %v72 = vld [vmem:[%s0 + $0x40] sm:$0x3f]
    %v73 = vld [vmem:[%s0 + $0x48] sm:$0x3f]
    %v74 = vld [vmem:[%s0 + $0x50] sm:$0x3f]
    %v75 = vld [vmem:[%s0 + $0x58] sm:$0x3f]
    %v76 = vld [vmem:[%s0 + $0x60] sm:$0x3f]
    %v77 = vld [vmem:[%s0 + $0x68] sm:$0x3f]
    %v78 = vld [vmem:[%s0 + $0x70] sm:$0x3f]
    %v79 = vld [vmem:[%s0 + $0x78] sm:$0x3f]
    %vm80 = vcmask 1045504
    %v81 = vsel %vm80, %v64, 0.0
    %v82 = vsel %vm80, %v65, 0.0
    %v83 = vadd.f32 %v81, %v82
    %v84 = vsel %vm80, %v66, 0.0
    %v85 = vadd.f32 %v83, %v84
    %v86 = vsel %vm80, %v67, 0.0
    %v87 = vadd.f32 %v85, %v86
    %v88 = vsel %vm80, %v68, 0.0
    %v89 = vadd.f32 %v87, %v88
    %v90 = vsel %vm80, %v69, 0.0
    %v91 = vadd.f32 %v89, %v90
    %v92 = vsel %vm80, %v70, 0.0
    %v93 = vadd.f32 %v91, %v92
    %v94 = vsel %vm80, %v71, 0.0
    %v95 = vadd.f32 %v93, %v94
    %96 = vadd.xlane.f32.xlu0 %v95
    %v97 = vpop.xlane.xlu0 %96
    %v98 = vsel %vm80, %v72, 0.0
    %v99 = vsel %vm80, %v73, 0.0
    %v100 = vadd.f32 %v98, %v99
    %v101 = vsel %vm80, %v74, 0.0
    %v102 = vadd.f32 %v100, %v101
    %v103 = vsel %vm80, %v75, 0.0
    %v104 = vadd.f32 %v102, %v103
    %v105 = vsel %vm80, %v76, 0.0
    %v106 = vadd.f32 %v104, %v105
    %v107 = vsel %vm80, %v77, 0.0
    %v108 = vadd.f32 %v106, %v107
    %v109 = vsel %vm80, %v78, 0.0
    %v110 = vadd.f32 %v108, %v109
    %v111 = vsel %vm80, %v79, 0.0
    %v112 = vadd.f32 %v110, %v111
    %113 = vadd.xlane.f32.xlu0 %v112
    %v114 = vpop.xlane.xlu0 %113
    %v117 = vlaneseq
    %v118 = vand.u32 %v117, 127
    %v119 = vlaneseq
    %v120 = vshrl.u32 %v119, 7
    %v121 = vsub.s32 %v118, %v120
    %v122 = vrot.slane %v97, %v121
    %v123 = vlaneseq
    %v124 = vshrl.u32 %v123, 7
    %v125 = vsub.s32 %v118, %v124
    %v126 = vrot.slane %v114, %v125
    %vm127 = vcmask 1041409
    %v128 = vsel %vm127, %v126, %v122
    %v130 = vadd.f32 %v63, %v128
    %vm131 = vcmask 41984
    %132 = vst.msk [vmem:[#allocation2] sm:$0x3] %vm131, %v130
    // Predicated region
    $region74: #{tpu_custom_call.1} parent=1 // pred_check
      %p133 = pneg %p57
    $region75: #{tpu_custom_call.1} parent=1 // pred_check_branch
      %135 = sbr.rel (%p133) target = $region77
    $region76: #{tpu_custom_call.1} parent=1 // pred_region
      %v136 = vld [vmem:[#allocation2] sm:$0x3]
      %v137 = vmul.f32 %v136, 0.0009765625
      %v138 = vld [vmem:[%s1] sm:$0x3]
      %v139 = vld [vmem:[%s2] sm:$0xff]
      %v140 = vld [vmem:[%s3] sm:$0x1]
      %v142 = vlaneseq
      %v143 = vshrl.u32 %v142, 7
      %v144 = vsub.s32 0, %v143
      %v145 = vrot.slane %v140, %v144
      %vm147 = vcmask 64512
      %v149 = vsel %vm147, %v138, 0
      %151 = vmatprep.subr.mxu0 0.0
      %152 = vmatpush1.msra.mxu0 %v139
      %153 = vmatprep.subr.mxu0 0.0
      %154 = vmatpush1.msra.mxu0 0.0
      %155 = vmatprep.subr.mxu0 0.0
      %156 = vmatpush1.msra.mxu0 0.0
      %157 = vmatprep.subr.mxu0 0.0
      %158 = vmatpush1.msra.mxu0 0.0
      %159 = vmatprep.subr.mxu0 0.0
      %160 = vmatpush1.msra.mxu0 0.0
      %161 = vmatprep.subr.mxu0 0.0
      %162 = vmatpush1.msra.mxu0 0.0
      %163 = vmatprep.subr.mxu0 0.0
      %164 = vmatpush1.msra.mxu0 0.0
      %165 = vmatprep.subr.mxu0 0.0
      %166 = vmatpush1.msra.mxu0 0.0
      %167 = vmatprep.subr.mxu0 0.0
      %168 = vmatpush1.msra.mxu0 0.0
      %169 = vmatprep.subr.mxu0 0.0
      %170 = vmatpush1.msra.mxu0 0.0
      %171 = vmatprep.subr.mxu0 0.0
      %172 = vmatpush1.msra.mxu0 0.0
      %173 = vmatprep.subr.mxu0 0.0
      %174 = vmatpush1.msra.mxu0 0.0
      %175 = vmatprep.subr.mxu0 0.0
      %176 = vmatpush1.msra.mxu0 0.0
      %177 = vmatprep.subr.mxu0 0.0
      %178 = vmatpush1.msra.mxu0 0.0
      %179 = vmatprep.subr.mxu0 0.0
      %180 = vmatpush1.msra.mxu0 0.0
      %181 = vmatprep.subr.mxu0 0.0
      %182 = vmatpush1.msra.mxu0 0.0
      %183 = vmatprep.subr.mxu0 0.0
      %184 = vmatpush1.msra.mxu0 0.0
      %185 = vmatprep.subr.mxu0 0.0
      %186 = vmatpush1.msra.mxu0 0.0
      %187 = vmatprep.subr.mxu0 0.0
      %188 = vmatpush1.msra.mxu0 0.0
      %189 = vmatprep.subr.mxu0 0.0
      %190 = vmatpush1.msra.mxu0 0.0
      %191 = vmatprep.subr.mxu0 0.0
      %192 = vmatpush1.msra.mxu0 0.0
      %193 = vmatprep.subr.mxu0 0.0
      %194 = vmatpush1.msra.mxu0 0.0
      %195 = vmatprep.subr.mxu0 0.0
      %196 = vmatpush1.msra.mxu0 0.0
      %197 = vmatprep.subr.mxu0 0.0
      %198 = vmatpush1.msra.mxu0 0.0
      %199 = vmatprep.subr.mxu0 0.0
      %200 = vmatpush1.msra.mxu0 0.0
      %201 = vmatprep.subr.mxu0 0.0
      %202 = vmatpush1.msra.mxu0 0.0
      %203 = vmatprep.subr.mxu0 0.0
      %204 = vmatpush1.msra.mxu0 0.0
      %205 = vmatprep.subr.mxu0 0.0
      %206 = vmatpush1.msra.mxu0 0.0
      %207 = vmatprep.subr.mxu0 0.0
      %208 = vmatpush1.msra.mxu0 0.0
      %209 = vmatprep.subr.mxu0 0.0
      %210 = vmatpush1.msra.mxu0 0.0
      %211 = vmatprep.subr.mxu0 0.0
      %212 = vmatpush1.msra.mxu0 0.0
      %213 = vmatprep.subr.mxu0 0.0
      %214 = vmatpush1.msra.mxu0 0.0
      %215 = vmatprep.mubr.f32.mxu0 0.0
      %216 = vmatmul.mubr.f32.gmra.mrb[0].mxu0 %v149
      %v217 = vpop.f32.mrb[0].mxu0
      %v218 = vadd.f32 %v145, %v217
      %v219 = vpop.f32.mrb[0].mxu0
      %220 = vdwg.mxu0
      %vm221 = vcmp.ge.f32.partialorder %v218, 0.0
      %v222 = vld [vmem:[%s4] sm:$0x1]
      %v224 = vlaneseq
      %v225 = vshrl.u32 %v224, 7
      %v226 = vsub.s32 0, %v225
      %v227 = vrot.slane %v222, %v226
      %v229 = vmul.f32 %v227, %v218
      %v230 = vsel %vm221, %v218, %v229
      %v231 = vld [vmem:[%s5] sm:$0xff]
      %v232 = vld [vmem:[%s5 + $0x8] sm:$0xff]
      %v233 = vld [vmem:[%s6] sm:$0x1]
      %v235 = vlaneseq
      %v236 = vshrl.u32 %v235, 7
      %v237 = vsub.s32 0, %v236
      %v238 = vrot.slane %v233, %v237
      %vm240 = vcmask 130048
      %v242 = vsel %vm240, %v230, 0
      %244 = vmatprep.subr.mxu0 0.0
      %245 = vmatpush1.msra.mxu0 %v231
      %246 = vmatprep.subr.mxu0 0.0
      %247 = vmatpush1.msra.mxu0 %v232
      %248 = vmatprep.subr.mxu0 0.0
      %249 = vmatpush1.msra.mxu0 0.0
      %250 = vmatprep.subr.mxu0 0.0
      %251 = vmatpush1.msra.mxu0 0.0
      %252 = vmatprep.subr.mxu0 0.0
      %253 = vmatpush1.msra.mxu0 0.0
      %254 = vmatprep.subr.mxu0 0.0
      %255 = vmatpush1.msra.mxu0 0.0
      %256 = vmatprep.subr.mxu0 0.0
      %257 = vmatpush1.msra.mxu0 0.0
      %258 = vmatprep.subr.mxu0 0.0
      %259 = vmatpush1.msra.mxu0 0.0
      %260 = vmatprep.subr.mxu0 0.0
      %261 = vmatpush1.msra.mxu0 0.0
      %262 = vmatprep.subr.mxu0 0.0
      %263 = vmatpush1.msra.mxu0 0.0
      %264 = vmatprep.subr.mxu0 0.0
      %265 = vmatpush1.msra.mxu0 0.0
      %266 = vmatprep.subr.mxu0 0.0
      %267 = vmatpush1.msra.mxu0 0.0
      %268 = vmatprep.subr.mxu0 0.0
      %269 = vmatpush1.msra.mxu0 0.0
      %270 = vmatprep.subr.mxu0 0.0
      %271 = vmatpush1.msra.mxu0 0.0
      %272 = vmatprep.subr.mxu0 0.0
      %273 = vmatpush1.msra.mxu0 0.0
      %274 = vmatprep.subr.mxu0 0.0
      %275 = vmatpush1.msra.mxu0 0.0
      %276 = vmatprep.subr.mxu0 0.0
      %277 = vmatpush1.msra.mxu0 0.0
      %278 = vmatprep.subr.mxu0 0.0
      %279 = vmatpush1.msra.mxu0 0.0
      %280 = vmatprep.subr.mxu0 0.0
      %281 = vmatpush1.msra.mxu0 0.0
      %282 = vmatprep.subr.mxu0 0.0
      %283 = vmatpush1.msra.mxu0 0.0
      %284 = vmatprep.subr.mxu0 0.0
      %285 = vmatpush1.msra.mxu0 0.0
      %286 = vmatprep.subr.mxu0 0.0
      %287 = vmatpush1.msra.mxu0 0.0
      %288 = vmatprep.subr.mxu0 0.0
      %289 = vmatpush1.msra.mxu0 0.0
      %290 = vmatprep.subr.mxu0 0.0
      %291 = vmatpush1.msra.mxu0 0.0
      %292 = vmatprep.subr.mxu0 0.0
      %293 = vmatpush1.msra.mxu0 0.0
      %294 = vmatprep.subr.mxu0 0.0
      %295 = vmatpush1.msra.mxu0 0.0
      %296 = vmatprep.subr.mxu0 0.0
      %297 = vmatpush1.msra.mxu0 0.0
      %298 = vmatprep.subr.mxu0 0.0
      %299 = vmatpush1.msra.mxu0 0.0
      %300 = vmatprep.subr.mxu0 0.0
      %301 = vmatpush1.msra.mxu0 0.0
      %302 = vmatprep.subr.mxu0 0.0
      %303 = vmatpush1.msra.mxu0 0.0
      %304 = vmatprep.subr.mxu0 0.0
      %305 = vmatpush1.msra.mxu0 0.0
      %306 = vmatprep.subr.mxu0 0.0
      %307 = vmatpush1.msra.mxu0 0.0
      %308 = vmatprep.mubr.f32.mxu0 0.0
      %309 = vmatmul.mubr.f32.gmra.mrb[0].mxu0 %v242
      %v310 = vpop.f32.mrb[0].mxu0
      %v311 = vadd.f32 %v238, %v310
      %v312 = vpop.f32.mrb[0].mxu0
      %313 = vdwg.mxu0
      %vm314 = vcmp.ge.f32.partialorder %v311, 0.0
      %v315 = vld [vmem:[%s7] sm:$0x1]
      %v317 = vlaneseq
      %v318 = vshrl.u32 %v317, 7
      %v319 = vsub.s32 0, %v318
      %v320 = vrot.slane %v315, %v319
      %v322 = vmul.f32 %v320, %v311
      %v323 = vsel %vm314, %v311, %v322
      %v324 = vld [vmem:[%s8] sm:$0xff]
      %v325 = vld [vmem:[%s8 + $0x8] sm:$0xff]
      %v326 = vld [vmem:[%s9] sm:$0x1]
      %v328 = vlaneseq
      %v329 = vshrl.u32 %v328, 7
      %v330 = vsub.s32 0, %v329
      %v331 = vrot.slane %v326, %v330
      %v334 = vsel %vm240, %v323, 0
      %336 = vmatprep.subr.mxu0 0.0
      %337 = vmatpush1.msra.mxu0 %v324
      %338 = vmatprep.subr.mxu0 0.0
      %339 = vmatpush1.msra.mxu0 %v325
      %340 = vmatprep.subr.mxu0 0.0
      %341 = vmatpush1.msra.mxu0 0.0
      %342 = vmatprep.subr.mxu0 0.0
      %343 = vmatpush1.msra.mxu0 0.0
      %344 = vmatprep.subr.mxu0 0.0
      %345 = vmatpush1.msra.mxu0 0.0
      %346 = vmatprep.subr.mxu0 0.0
      %347 = vmatpush1.msra.mxu0 0.0
      %348 = vmatprep.subr.mxu0 0.0
      %349 = vmatpush1.msra.mxu0 0.0
      %350 = vmatprep.subr.mxu0 0.0
      %351 = vmatpush1.msra.mxu0 0.0
      %352 = vmatprep.subr.mxu0 0.0
      %353 = vmatpush1.msra.mxu0 0.0
      %354 = vmatprep.subr.mxu0 0.0
      %355 = vmatpush1.msra.mxu0 0.0
      %356 = vmatprep.subr.mxu0 0.0
      %357 = vmatpush1.msra.mxu0 0.0
      %358 = vmatprep.subr.mxu0 0.0
      %359 = vmatpush1.msra.mxu0 0.0
      %360 = vmatprep.subr.mxu0 0.0
      %361 = vmatpush1.msra.mxu0 0.0
      %362 = vmatprep.subr.mxu0 0.0
      %363 = vmatpush1.msra.mxu0 0.0
      %364 = vmatprep.subr.mxu0 0.0
      %365 = vmatpush1.msra.mxu0 0.0
      %366 = vmatprep.subr.mxu0 0.0
      %367 = vmatpush1.msra.mxu0 0.0
      %368 = vmatprep.subr.mxu0 0.0
      %369 = vmatpush1.msra.mxu0 0.0
      %370 = vmatprep.subr.mxu0 0.0
      %371 = vmatpush1.msra.mxu0 0.0
      %372 = vmatprep.subr.mxu0 0.0
      %373 = vmatpush1.msra.mxu0 0.0
      %374 = vmatprep.subr.mxu0 0.0
      %375 = vmatpush1.msra.mxu0 0.0
      %376 = vmatprep.subr.mxu0 0.0
      %377 = vmatpush1.msra.mxu0 0.0
      %378 = vmatprep.subr.mxu0 0.0
      %379 = vmatpush1.msra.mxu0 0.0
      %380 = vmatprep.subr.mxu0 0.0
      %381 = vmatpush1.msra.mxu0 0.0
      %382 = vmatprep.subr.mxu0 0.0
      %383 = vmatpush1.msra.mxu0 0.0
      %384 = vmatprep.subr.mxu0 0.0
      %385 = vmatpush1.msra.mxu0 0.0
      %386 = vmatprep.subr.mxu0 0.0
      %387 = vmatpush1.msra.mxu0 0.0
      %388 = vmatprep.subr.mxu0 0.0
      %389 = vmatpush1.msra.mxu0 0.0
      %390 = vmatprep.subr.mxu0 0.0
      %391 = vmatpush1.msra.mxu0 0.0
      %392 = vmatprep.subr.mxu0 0.0
      %393 = vmatpush1.msra.mxu0 0.0
      %394 = vmatprep.subr.mxu0 0.0
      %395 = vmatpush1.msra.mxu0 0.0
      %396 = vmatprep.subr.mxu0 0.0
      %397 = vmatpush1.msra.mxu0 0.0
      %398 = vmatprep.subr.mxu0 0.0
      %399 = vmatpush1.msra.mxu0 0.0
      %400 = vmatprep.mubr.f32.mxu0 0.0
      %401 = vmatmul.mubr.f32.gmra.mrb[0].mxu0 %v334
      %v402 = vpop.f32.mrb[0].mxu0
      %v403 = vadd.f32 %v331, %v402
      %v404 = vpop.f32.mrb[0].mxu0
      %405 = vdwg.mxu0
      %v406 = vmul.f32 %v403, %v137
      %v407 = vld [vmem:[%s10] sm:$0x3f]
      %vm408 = vcmask 48128
      %v410 = vsel %vm408, %v406, 0
      %v413 = vsel %vm80, %v407, 0
      %415 = vmatprep.subr.mxu0 0.0
      %416 = vmatpush1.msra.mxu0 %v413
      %417 = vmatprep.subr.mxu0 0.0
      %418 = vmatpush1.msra.mxu0 0.0
      %419 = vmatprep.subr.mxu0 0.0
      %420 = vmatpush1.msra.mxu0 0.0
      %421 = vmatprep.subr.mxu0 0.0
      %422 = vmatpush1.msra.mxu0 0.0
      %423 = vmatprep.subr.mxu0 0.0
      %424 = vmatpush1.msra.mxu0 0.0
      %425 = vmatprep.subr.mxu0 0.0
      %426 = vmatpush1.msra.mxu0 0.0
      %427 = vmatprep.subr.mxu0 0.0
      %428 = vmatpush1.msra.mxu0 0.0
      %429 = vmatprep.subr.mxu0 0.0
      %430 = vmatpush1.msra.mxu0 0.0
      %431 = vmatprep.subr.mxu0 0.0
      %432 = vmatpush1.msra.mxu0 0.0
      %433 = vmatprep.subr.mxu0 0.0
      %434 = vmatpush1.msra.mxu0 0.0
      %435 = vmatprep.subr.mxu0 0.0
      %436 = vmatpush1.msra.mxu0 0.0
      %437 = vmatprep.subr.mxu0 0.0
      %438 = vmatpush1.msra.mxu0 0.0
      %439 = vmatprep.subr.mxu0 0.0
      %440 = vmatpush1.msra.mxu0 0.0
      %441 = vmatprep.subr.mxu0 0.0
      %442 = vmatpush1.msra.mxu0 0.0
      %443 = vmatprep.subr.mxu0 0.0
      %444 = vmatpush1.msra.mxu0 0.0
      %445 = vmatprep.subr.mxu0 0.0
      %446 = vmatpush1.msra.mxu0 0.0
      %447 = vmatprep.subr.mxu0 0.0
      %448 = vmatpush1.msra.mxu0 0.0
      %449 = vmatprep.subr.mxu0 0.0
      %450 = vmatpush1.msra.mxu0 0.0
      %451 = vmatprep.subr.mxu0 0.0
      %452 = vmatpush1.msra.mxu0 0.0
      %453 = vmatprep.subr.mxu0 0.0
      %454 = vmatpush1.msra.mxu0 0.0
      %455 = vmatprep.subr.mxu0 0.0
      %456 = vmatpush1.msra.mxu0 0.0
      %457 = vmatprep.subr.mxu0 0.0
      %458 = vmatpush1.msra.mxu0 0.0
      %459 = vmatprep.subr.mxu0 0.0
      %460 = vmatpush1.msra.mxu0 0.0
      %461 = vmatprep.subr.mxu0 0.0
      %462 = vmatpush1.msra.mxu0 0.0
      %463 = vmatprep.subr.mxu0 0.0
      %464 = vmatpush1.msra.mxu0 0.0
      %465 = vmatprep.subr.mxu0 0.0
      %466 = vmatpush1.msra.mxu0 0.0
      %467 = vmatprep.subr.mxu0 0.0
      %468 = vmatpush1.msra.mxu0 0.0
      %469 = vmatprep.subr.mxu0 0.0
      %470 = vmatpush1.msra.mxu0 0.0
      %471 = vmatprep.subr.mxu0 0.0
      %472 = vmatpush1.msra.mxu0 0.0
      %473 = vmatprep.subr.mxu0 0.0
      %474 = vmatpush1.msra.mxu0 0.0
      %475 = vmatprep.subr.mxu0 0.0
      %476 = vmatpush1.msra.mxu0 0.0
      %477 = vmatprep.subr.mxu0 0.0
      %478 = vmatpush1.msra.mxu0 0.0
      %479 = vmatprep.mubr.f32.mxu0 0.0
      %480 = vmatmul.mubr.f32.gmra.mrb[0].mxu0 %v410
      %v481 = vpop.f32.mrb[0].mxu0
      %v482 = vadd.f32 0.0, %v481
      %v483 = vpop.f32.mrb[0].mxu0
      %484 = vdwg.mxu0
      %v485 = vmul.f32 %v403, %v403
      %v486 = vld [vmem:[%s11] sm:$0x3f]
      %v488 = vsel %vm408, %v485, 0
      %v491 = vsel %vm80, %v486, 0
      %493 = vmatprep.subr.mxu0 0.0
      %494 = vmatpush1.msra.mxu0 %v491
      %495 = vmatprep.subr.mxu0 0.0
      %496 = vmatpush1.msra.mxu0 0.0
      %497 = vmatprep.subr.mxu0 0.0
      %498 = vmatpush1.msra.mxu0 0.0
      %499 = vmatprep.subr.mxu0 0.0
      %500 = vmatpush1.msra.mxu0 0.0
      %501 = vmatprep.subr.mxu0 0.0
      %502 = vmatpush1.msra.mxu0 0.0
      %503 = vmatprep.subr.mxu0 0.0
      %504 = vmatpush1.msra.mxu0 0.0
      %505 = vmatprep.subr.mxu0 0.0
      %506 = vmatpush1.msra.mxu0 0.0
      %507 = vmatprep.subr.mxu0 0.0
      %508 = vmatpush1.msra.mxu0 0.0
      %509 = vmatprep.subr.mxu0 0.0
      %510 = vmatpush1.msra.mxu0 0.0
      %511 = vmatprep.subr.mxu0 0.0
      %512 = vmatpush1.msra.mxu0 0.0
      %513 = vmatprep.subr.mxu0 0.0
      %514 = vmatpush1.msra.mxu0 0.0
      %515 = vmatprep.subr.mxu0 0.0
      %516 = vmatpush1.msra.mxu0 0.0
      %517 = vmatprep.subr.mxu0 0.0
      %518 = vmatpush1.msra.mxu0 0.0
      %519 = vmatprep.subr.mxu0 0.0
      %520 = vmatpush1.msra.mxu0 0.0
      %521 = vmatprep.subr.mxu0 0.0
      %522 = vmatpush1.msra.mxu0 0.0
      %523 = vmatprep.subr.mxu0 0.0
      %524 = vmatpush1.msra.mxu0 0.0
      %525 = vmatprep.subr.mxu0 0.0
      %526 = vmatpush1.msra.mxu0 0.0
      %527 = vmatprep.subr.mxu0 0.0
      %528 = vmatpush1.msra.mxu0 0.0
      %529 = vmatprep.subr.mxu0 0.0
      %530 = vmatpush1.msra.mxu0 0.0
      %531 = vmatprep.subr.mxu0 0.0
      %532 = vmatpush1.msra.mxu0 0.0
      %533 = vmatprep.subr.mxu0 0.0
      %534 = vmatpush1.msra.mxu0 0.0
      %535 = vmatprep.subr.mxu0 0.0
      %536 = vmatpush1.msra.mxu0 0.0
      %537 = vmatprep.subr.mxu0 0.0
      %538 = vmatpush1.msra.mxu0 0.0
      %539 = vmatprep.subr.mxu0 0.0
      %540 = vmatpush1.msra.mxu0 0.0
      %541 = vmatprep.subr.mxu0 0.0
      %542 = vmatpush1.msra.mxu0 0.0
      %543 = vmatprep.subr.mxu0 0.0
      %544 = vmatpush1.msra.mxu0 0.0
      %545 = vmatprep.subr.mxu0 0.0
      %546 = vmatpush1.msra.mxu0 0.0
      %547 = vmatprep.subr.mxu0 0.0
      %548 = vmatpush1.msra.mxu0 0.0
      %549 = vmatprep.subr.mxu0 0.0
      %550 = vmatpush1.msra.mxu0 0.0
      %551 = vmatprep.subr.mxu0 0.0
      %552 = vmatpush1.msra.mxu0 0.0
      %553 = vmatprep.subr.mxu0 0.0
      %554 = vmatpush1.msra.mxu0 0.0
      %555 = vmatprep.subr.mxu0 0.0
      %556 = vmatpush1.msra.mxu0 0.0
      %557 = vmatprep.mubr.f32.mxu0 0.0
      %558 = vmatmul.mubr.f32.gmra.mrb[0].mxu0 %v488
      %v559 = vpop.f32.mrb[0].mxu0
      %v560 = vadd.f32 1e-08, %v559
      %v561 = vpop.f32.mrb[0].mxu0
      %562 = vdwg.mxu0
      %v563 = vrsqrt.pop %v560
      %v564 = vmul.f32 %v482, %v563
      %v565 = vld [vmem:[%s12] sm:$0x1]
      %v567 = vlaneseq
      %v568 = vshrl.u32 %v567, 7
      %v569 = vsub.s32 0, %v568
      %v570 = vrot.slane %v565, %v569
      %v572 = vadd.f32 %v564, %v570
      %vm573 = vcmp.ge.f32.partialorder %v572, 0.0
      %v574 = vld [vmem:[%s13] sm:$0x1]
      %v576 = vlaneseq
      %v577 = vshrl.u32 %v576, 7
      %v578 = vsub.s32 0, %v577
      %v579 = vrot.slane %v574, %v578
      %v581 = vmul.f32 %v579, %v572
      %v582 = vsel %vm573, %v572, %v581
      %584 = vrot.lane.b32.xlu0 %v582, 6
      %v585 = vpop.permute.xlu0 %584
      %v587 = vmul.f32 %v403, %v585
      %v588 = vld [vmem:[%s14] sm:$0xf]
      %590 = vrot.lane.b32.xlu0 %v587, 122
      %v591 = vpop.permute.xlu0 %590
      %vm592 = vcmask 31744
      %v593 = vsel %vm592, %v591, 0
      %vm595 = vcmask 1043456
      %v597 = vsel %vm595, %v588, 0
      %599 = vmatprep.subr.mxu0 0.0
      %600 = vmatpush1.msra.mxu0 %v597
      %601 = vmatprep.subr.mxu0 0.0
      %602 = vmatpush1.msra.mxu0 0.0
      %603 = vmatprep.subr.mxu0 0.0
      %604 = vmatpush1.msra.mxu0 0.0
      %605 = vmatprep.subr.mxu0 0.0
      %606 = vmatpush1.msra.mxu0 0.0
      %607 = vmatprep.subr.mxu0 0.0
      %608 = vmatpush1.msra.mxu0 0.0
      %609 = vmatprep.subr.mxu0 0.0
      %610 = vmatpush1.msra.mxu0 0.0
      %611 = vmatprep.subr.mxu0 0.0
      %612 = vmatpush1.msra.mxu0 0.0
      %613 = vmatprep.subr.mxu0 0.0
      %614 = vmatpush1.msra.mxu0 0.0
      %615 = vmatprep.subr.mxu0 0.0
      %616 = vmatpush1.msra.mxu0 0.0
      %617 = vmatprep.subr.mxu0 0.0
      %618 = vmatpush1.msra.mxu0 0.0
      %619 = vmatprep.subr.mxu0 0.0
      %620 = vmatpush1.msra.mxu0 0.0
      %621 = vmatprep.subr.mxu0 0.0
      %622 = vmatpush1.msra.mxu0 0.0
      %623 = vmatprep.subr.mxu0 0.0
      %624 = vmatpush1.msra.mxu0 0.0
      %625 = vmatprep.subr.mxu0 0.0
      %626 = vmatpush1.msra.mxu0 0.0
      %627 = vmatprep.subr.mxu0 0.0
      %628 = vmatpush1.msra.mxu0 0.0
      %629 = vmatprep.subr.mxu0 0.0
      %630 = vmatpush1.msra.mxu0 0.0
      %631 = vmatprep.subr.mxu0 0.0
      %632 = vmatpush1.msra.mxu0 0.0
      %633 = vmatprep.subr.mxu0 0.0
      %634 = vmatpush1.msra.mxu0 0.0
      %635 = vmatprep.subr.mxu0 0.0
      %636 = vmatpush1.msra.mxu0 0.0
      %637 = vmatprep.subr.mxu0 0.0
      %638 = vmatpush1.msra.mxu0 0.0
      %639 = vmatprep.subr.mxu0 0.0
      %640 = vmatpush1.msra.mxu0 0.0
      %641 = vmatprep.subr.mxu0 0.0
      %642 = vmatpush1.msra.mxu0 0.0
      %643 = vmatprep.subr.mxu0 0.0
      %644 = vmatpush1.msra.mxu0 0.0
      %645 = vmatprep.subr.mxu0 0.0
      %646 = vmatpush1.msra.mxu0 0.0
      %647 = vmatprep.subr.mxu0 0.0
      %648 = vmatpush1.msra.mxu0 0.0
      %649 = vmatprep.subr.mxu0 0.0
      %650 = vmatpush1.msra.mxu0 0.0
      %651 = vmatprep.subr.mxu0 0.0
      %652 = vmatpush1.msra.mxu0 0.0
      %653 = vmatprep.subr.mxu0 0.0
      %654 = vmatpush1.msra.mxu0 0.0
      %655 = vmatprep.subr.mxu0 0.0
      %656 = vmatpush1.msra.mxu0 0.0
      %657 = vmatprep.subr.mxu0 0.0
      %658 = vmatpush1.msra.mxu0 0.0
      %659 = vmatprep.subr.mxu0 0.0
      %660 = vmatpush1.msra.mxu0 0.0
      %661 = vmatprep.subr.mxu0 0.0
      %662 = vmatpush1.msra.mxu0 0.0
      %663 = vmatprep.mubr.f32.mxu0 0.0
      %664 = vmatmul.mubr.f32.gmra.mrb[0].mxu0 %v593
      %v665 = vpop.f32.mrb[0].mxu0
      %v666 = vadd.f32 0.0, %v665
      %v667 = vpop.f32.mrb[0].mxu0
      %668 = vdwg.mxu0
      %v669 = vld [vmem:[%s15] sm:$0xf]
      %670 = vrot.lane.b32.xlu0 %v485, 122
      %v671 = vpop.permute.xlu0 %670
      %v672 = vsel %vm592, %v671, 0
      %v675 = vsel %vm595, %v669, 0
      %677 = vmatprep.subr.mxu0 0.0
      %678 = vmatpush1.msra.mxu0 %v675
      %679 = vmatprep.subr.mxu0 0.0
      %680 = vmatpush1.msra.mxu0 0.0
      %681 = vmatprep.subr.mxu0 0.0
      %682 = vmatpush1.msra.mxu0 0.0
      %683 = vmatprep.subr.mxu0 0.0
      %684 = vmatpush1.msra.mxu0 0.0
      %685 = vmatprep.subr.mxu0 0.0
      %686 = vmatpush1.msra.mxu0 0.0
      %687 = vmatprep.subr.mxu0 0.0
      %688 = vmatpush1.msra.mxu0 0.0
      %689 = vmatprep.subr.mxu0 0.0
      %690 = vmatpush1.msra.mxu0 0.0
      %691 = vmatprep.subr.mxu0 0.0
      %692 = vmatpush1.msra.mxu0 0.0
      %693 = vmatprep.subr.mxu0 0.0
      %694 = vmatpush1.msra.mxu0 0.0
      %695 = vmatprep.subr.mxu0 0.0
      %696 = vmatpush1.msra.mxu0 0.0
      %697 = vmatprep.subr.mxu0 0.0
      %698 = vmatpush1.msra.mxu0 0.0
      %699 = vmatprep.subr.mxu0 0.0
      %700 = vmatpush1.msra.mxu0 0.0
      %701 = vmatprep.subr.mxu0 0.0
      %702 = vmatpush1.msra.mxu0 0.0
      %703 = vmatprep.subr.mxu0 0.0
      %704 = vmatpush1.msra.mxu0 0.0
      %705 = vmatprep.subr.mxu0 0.0
      %706 = vmatpush1.msra.mxu0 0.0
      %707 = vmatprep.subr.mxu0 0.0
      %708 = vmatpush1.msra.mxu0 0.0
      %709 = vmatprep.subr.mxu0 0.0
      %710 = vmatpush1.msra.mxu0 0.0
      %711 = vmatprep.subr.mxu0 0.0
      %712 = vmatpush1.msra.mxu0 0.0
      %713 = vmatprep.subr.mxu0 0.0
      %714 = vmatpush1.msra.mxu0 0.0
      %715 = vmatprep.subr.mxu0 0.0
      %716 = vmatpush1.msra.mxu0 0.0
      %717 = vmatprep.subr.mxu0 0.0
      %718 = vmatpush1.msra.mxu0 0.0
      %719 = vmatprep.subr.mxu0 0.0
      %720 = vmatpush1.msra.mxu0 0.0
      %721 = vmatprep.subr.mxu0 0.0
      %722 = vmatpush1.msra.mxu0 0.0
      %723 = vmatprep.subr.mxu0 0.0
      %724 = vmatpush1.msra.mxu0 0.0
      %725 = vmatprep.subr.mxu0 0.0
      %726 = vmatpush1.msra.mxu0 0.0
      %727 = vmatprep.subr.mxu0 0.0
      %728 = vmatpush1.msra.mxu0 0.0
      %729 = vmatprep.subr.mxu0 0.0
      %730 = vmatpush1.msra.mxu0 0.0
      %731 = vmatprep.subr.mxu0 0.0
      %732 = vmatpush1.msra.mxu0 0.0
      %733 = vmatprep.subr.mxu0 0.0
      %734 = vmatpush1.msra.mxu0 0.0
      %735 = vmatprep.subr.mxu0 0.0
      %736 = vmatpush1.msra.mxu0 0.0
      %737 = vmatprep.subr.mxu0 0.0
      %738 = vmatpush1.msra.mxu0 0.0
      %739 = vmatprep.subr.mxu0 0.0
      %740 = vmatpush1.msra.mxu0 0.0
      %741 = vmatprep.mubr.f32.mxu0 0.0
      %742 = vmatmul.mubr.f32.gmra.mrb[0].mxu0 %v672
      %v743 = vpop.f32.mrb[0].mxu0
      %v744 = vadd.f32 1e-08, %v743
      %v745 = vpop.f32.mrb[0].mxu0
      %746 = vdwg.mxu0
      %v747 = vrsqrt.pop %v744
      %v748 = vmul.f32 %v666, %v747
      %v749 = vld [vmem:[%s16] sm:$0x1]
      %v751 = vlaneseq
      %v752 = vshrl.u32 %v751, 7
      %v753 = vsub.s32 0, %v752
      %v754 = vrot.slane %v749, %v753
      %v756 = vadd.f32 %v748, %v754
      %v757 = vxor.u32 %v756, 2147483648
      %v758 = vmul.f32 %v757, 1.442695
      %v759 = vpow.pop %v758
      %v760 = vadd.f32 %v759, 1.0
      %v761 = vrcp.pop %v760
      %v762 = vmul.f32 1.0, %v761
      %763 = vst [vmem:[#allocation3] sm:$0x3] %v762
    $region77: #{tpu_custom_call.1} parent=1 // pred_fallthru
      _
    // Predicated region
    $region78: #{tpu_custom_call.1} parent=1 // pred_check
      _
    $region79: #{tpu_custom_call.1} parent=1 // pred_check_branch
      %765 = sbr.rel (0) target = $region81
    $region80: #{tpu_custom_call.1} parent=1 // pred_region
      %s767 = ssub.s32 32, 32
      %768 = vsyncadd [#allocation4], %s767
      %s770 = sshll.u32 [#allocation3], 4
      %s771 = int_to_ptr.vmem [resolvable:$true] %s770
      %773 = dma.vmem_to_hbm [thread:$0]  %s771, 32, %s17, [#allocation4]
    $region81: #{tpu_custom_call.1} parent=1 // pred_fallthru
      _
    // Predicated region
    $region82: #{tpu_custom_call.1} parent=1 // pred_check
      _
    $region83: #{tpu_custom_call.1} parent=1 // pred_check_branch
      %775 = sbr.rel (0) target = $region85
    $region84: #{tpu_custom_call.1} parent=1 // pred_region
      %776 = dma.done [#allocation4], 32
    $region85: #{tpu_custom_call.1} parent=1 // pred_fallthru
      _
    %777 = vsyncpa [#allocation4], 1

</llo_original>
